<compile_context>
chip_gen: v7x
topology: tpu7x:2x2x1
jax: 0.10.0
libtpu: 0.0.40
codegen_flags: <defaults>
</compile_context>

<pallas_src>
import functools
import math

import jax
import jax.numpy as jnp
from jax import lax
from jax.experimental import pallas as pl
from jax.experimental.pallas import tpu as pltpu


def _round_up(x, m):
    return ((x + m - 1) // m) * m


def _pad2d(a, rows, cols):
    r, c = a.shape
    if r == rows and c == cols:
        return a
    return jnp.zeros((rows, cols), a.dtype).at[:r, :c].set(a)


def _pick_tile(n, pref, gran):
    """Largest multiple of `gran` that divides `n` and is <= max(pref, gran)."""
    assert n % gran == 0
    m = n // gran
    cap = max(pref // gran, 1)
    best = 1
    d = 1
    while d * d <= m:
        if m % d == 0:
            if d <= cap:
                best = max(best, d)
            other = m // d
            if other <= cap:
                best = max(best, other)
        d += 1
    return best * gran


# --------------------------------------------------------------------------
# Kernel: z = adj @ support + bias ; q = softassign(z, mu)
#   grid = (row_tiles, col_tiles); the col axis is the contraction over adj
#   columns. support is a single VMEM-resident block (constant block index).
# --------------------------------------------------------------------------
def _gcdec_kernel(adj_ref, s_ref, b_ref, mu_t_ref, mu_sq_ref, z_ref, q_ref, *,
                  alpha, num_clusters, tk):
    k = pl.program_id(1)

    # Initialize the VMEM-resident z output block with the broadcast bias and
    # accumulate adj-tile @ support-slice directly into it (no scratch).
    @pl.when(k == 0)
    def _():
        z_ref[...] = jnp.broadcast_to(b_ref[...], z_ref.shape)

    col0 = pl.multiple_of(k * tk, tk)
    z_ref[...] += jnp.dot(adj_ref[...], s_ref[pl.ds(col0, tk), :],
                          preferred_element_type=jnp.float32)

    # Epilogue on the last contraction step: squared distances via the
    # expanded form (one MXU matmul), then the student-t soft assignment.
    @pl.when(k == pl.num_programs(1) - 1)
    def _():
        z = z_ref[...]                                          # (tm, H)
        cross = jnp.dot(z, mu_t_ref[...],
                        preferred_element_type=jnp.float32)     # (tm, Kp)
        z_sq = jnp.sum(z * z, axis=1, keepdims=True)            # (tm, 1)
        d2 = jnp.maximum(z_sq - 2.0 * cross + mu_sq_ref[...], 0.0)

        # q_ij ∝ (1 + d2/alpha + 1e-8)^-(alpha+1); the reference's /2 cancels
        # in the row normalization.  A row-wise shift in log space (also
        # cancels in the normalization) guards against full-row underflow.
        logt = jnp.log(1.0 + d2 * (1.0 / alpha) + 1e-8)
        col = lax.broadcasted_iota(jnp.int32, logt.shape, 1)
        valid = col < num_clusters                               # mask lane pad
        logt_min = jnp.min(jnp.where(valid, logt, jnp.inf), axis=1,
                           keepdims=True)
        qhat = jnp.where(valid,
                         jnp.exp(-(alpha + 1.0) * (logt - logt_min)), 0.0)
        q_ref[...] = qhat / jnp.sum(qhat, axis=1, keepdims=True)


# --------------------------------------------------------------------------
# Wrapper
# --------------------------------------------------------------------------
def simple_gcdec_forward(x, adj, weight, bias, mu, alpha=0.2, *,
                         block_m=128, block_k=2048):
    x = x.astype(jnp.float32)
    adj = adj.astype(jnp.float32)
    weight = weight.astype(jnp.float32)
    bias = jnp.asarray(bias).reshape(1, -1).astype(jnp.float32)
    mu = mu.astype(jnp.float32)

    N, F = x.shape
    H = weight.shape[1]
    K = mu.shape[0]

    # support = x @ W: tiny (O(N*F*H)) — left to XLA, computed exactly once,
    # then streamed into the main kernel as a VMEM-resident block.
    support = x @ weight                                        # (N, H) f32

    # ---- tiling (respect the (8,128) layout rules; avoid adj padding) -----
    row_gran, col_gran = 8, 128
    n_rows = N if N % row_gran == 0 else _round_up(N, row_gran)
    n_cols = N if N % col_gran == 0 else _round_up(N, col_gran)

    tm = _pick_tile(n_rows, block_m, row_gran)
    # Keep >= 2 row tiles so the "parallel" axis shards across both v7x TCs.
    if n_rows // tm < 2 and n_rows >= 2 * row_gran:
        tm = _pick_tile(n_rows, n_rows // 2, row_gran)
    tk = _pick_tile(n_cols, block_k, col_gran)

    ni = n_rows // tm
    nk = n_cols // tk
    k_pad = _round_up(K, col_gran)                              # lane-dense q

    # Pad only in the ragged fallback (padding adj costs ~ the kernel itself).
    adj_p = adj if (n_rows == N and n_cols == N) else _pad2d(adj, n_rows, n_cols)
    sup_p = support if n_cols == N else _pad2d(support, n_cols, H)

    mu_t = _pad2d(mu.T, H, k_pad)                               # (H, Kp)
    mu_sq = jnp.sum(mu_t * mu_t, axis=0, keepdims=True)         # (1, Kp), hoisted

    kernel = functools.partial(_gcdec_kernel, alpha=float(alpha),
                               num_clusters=K, tk=tk)

    cost = pl.CostEstimate(
        flops=int(2 * (n_rows * n_cols * H + n_rows * H * k_pad)),
        transcendentals=int(2 * n_rows * k_pad),
        bytes_accessed=int(4 * (n_rows * n_cols + n_cols * H + H * k_pad
                                + n_rows * H + n_rows * k_pad)),
    )

    # VMEM budget: 3x adj tile buffers + double-buffered resident support +
    # output blocks + small constants; keep within v7x's 64 MiB per-TC VMEM.
    vmem_need = 4 * (3 * tm * tk
                     + 2 * n_cols * H
                     + 2 * tm * (H + k_pad)
                     + 2 * (H * k_pad + k_pad + H))
    vmem_limit = int(min(max(vmem_need * 3 // 2, 32 * 1024 * 1024),
                         96 * 1024 * 1024))

    adj_index = lambda i, k: (i, k)

    def _run(adj_spec):
        return pl.pallas_call(
            kernel,
            out_shape=(
                jax.ShapeDtypeStruct((n_rows, H), jnp.float32),
                jax.ShapeDtypeStruct((n_rows, k_pad), jnp.float32),
            ),
            grid=(ni, nk),
            in_specs=[
                adj_spec,                                        # adj (streamed)
                pl.BlockSpec((n_cols, H), lambda i, k: (0, 0)),  # support (resident)
                pl.BlockSpec((1, H), lambda i, k: (0, 0)),       # bias
                pl.BlockSpec((H, k_pad), lambda i, k: (0, 0)),   # mu^T (padded)
                pl.BlockSpec((1, k_pad), lambda i, k: (0, 0)),   # ||mu||^2
            ],
            out_specs=(
                pl.BlockSpec((tm, H), lambda i, k: (i, 0)),      # z (accumulator)
                pl.BlockSpec((tm, k_pad), lambda i, k: (i, 0)),  # q (lane-dense)
            ),
            compiler_params=pltpu.CompilerParams(
                dimension_semantics=("parallel", "arbitrary"),
                vmem_limit_bytes=vmem_limit,
            ),
            cost_estimate=cost,
        )(adj_p, sup_p, bias, mu_t, mu_sq)

    try:
        # Deeper adj prefetch so the per-row-tile epilogue (z@mu^T, exp/log,
        # normalize) doesn't stall the adj stream at row-tile boundaries.
        z_p, q_p = _run(pl.BlockSpec((tm, tk), adj_index,
                                     pipeline_mode=pl.Buffered(3)))
    except Exception:
        # Fallback for environments without BlockSpec pipeline_mode support.
        z_p, q_p = _run(pl.BlockSpec((tm, tk), adj_index))

    return z_p[:N, :], q_p[:N, :K]


# --------------------------------------------------------------------------
# Pure-JAX reference (mirrors the PyTorch module verbatim)
# --------------------------------------------------------------------------
def _reference_forward(x, adj, weight, bias, mu, alpha=0.2):
    support = x @ weight
    z = adj @ support + bias[0]
    d2 = jnp.sum((z[:, None, :] - mu[None, :, :]) ** 2, axis=2)
    q = 1.0 / (1.0 + d2 / alpha + 1e-8)
    q = q ** (alpha + 1.0) / 2.0
    q = q / jnp.sum(q, axis=1, keepdims=True)
    return z, q


if __name__ == "__main__":
    # Small shapes consistent with the module: N nodes, nfeat -> nhid, K clusters.
    # TODO(synk): fit()/loss_function()/target_distribution() (training loop,
    # louvain/kmeans init) are host-side training utilities, not the forward
    # pass, and are not translated.
    N, NFEAT, NHID, K = 128, 64, 32, 8
    ALPHA = 0.2

    key = jax.random.PRNGKey(0)
    kx, kadj, kw, kb, kmu = jax.random.split(key, 5)

    # Node features and a dense row-normalized adjacency matrix.
    x = jax.random.normal(kx, (N, NFEAT), dtype=jnp.float32)
    adj_raw = jax.random.uniform(kadj, (N, N), dtype=jnp.float32)
    adj = adj_raw / jnp.sum(adj_raw, axis=1, keepdims=True)

    # GraphConvolution.reset_parameters: uniform(-stdv, stdv), stdv = 1/sqrt(out)
    stdv = 1.0 / math.sqrt(NHID)
    weight = jax.random.uniform(kw, (NFEAT, NHID), dtype=jnp.float32,
                                minval=-stdv, maxval=stdv)
    bias = jax.random.uniform(kb, (1, NHID), dtype=jnp.float32,
                              minval=-stdv, maxval=stdv)
    # mu (cluster centers) is set during fit(); initialize deterministically.
    mu = jax.random.normal(kmu, (K, NHID), dtype=jnp.float32)

    z, q = simple_gcdec_forward(x, adj, weight, bias, mu, alpha=ALPHA)
    jax.block_until_ready((z, q))

    z_ref, q_ref = _reference_forward(x, adj, weight, bias, mu, alpha=ALPHA)
    assert z.shape == (N, NHID) and q.shape == (N, K)
    assert jnp.allclose(z, z_ref, atol=1e-4, rtol=1e-4)
    assert jnp.allclose(q, q_ref, atol=1e-5, rtol=1e-4)
    assert jnp.allclose(jnp.sum(q, axis=1), 1.0, atol=1e-5)

    print("KERNEL_OK")
</pallas_src>

<mosaic_0001>
module attributes {stable_mosaic.version = 11 : i64} {
  func.func @_gcdec_kernel(%arg0: i32, %arg1: i32, %arg2: memref<64x128xf32, #tpu.memory_space<vmem>>, %arg3: memref<128x32xf32, #tpu.memory_space<vmem>>, %arg4: memref<1x32xf32, #tpu.memory_space<vmem>>, %arg5: memref<32x128xf32, #tpu.memory_space<vmem>>, %arg6: memref<1x128xf32, #tpu.memory_space<vmem>>, %arg7: memref<64x32xf32, #tpu.memory_space<vmem>>, %arg8: memref<64x128xf32, #tpu.memory_space<vmem>>) attributes {dimension_semantics = [#tpu.dimension_semantics<parallel>, #tpu.dimension_semantics<arbitrary>], iteration_bounds = array<i64: 2, 1>, scalar_prefetch = 0 : i64, scratch_operands = 0 : i64, tpu.core_type = #tpu.core_type<tc>, window_params = [{transform_indices = @transform_0, window_bounds = array<i64: 64, 128>}, {pipeline_mode = #tpu.pipeline_mode<synchronous>, transform_indices = @transform_1, window_bounds = array<i64: 128, 32>}, {pipeline_mode = #tpu.pipeline_mode<synchronous>, transform_indices = @transform_2, window_bounds = array<i64: 1, 32>}, {pipeline_mode = #tpu.pipeline_mode<synchronous>, transform_indices = @transform_3, window_bounds = array<i64: 32, 128>}, {pipeline_mode = #tpu.pipeline_mode<synchronous>, transform_indices = @transform_4, window_bounds = array<i64: 1, 128>}, {transform_indices = @transform_5, window_bounds = array<i64: 64, 32>}, {transform_indices = @transform_6, window_bounds = array<i64: 64, 128>}]} {
    %c0_i32 = arith.constant 0 : i32
    %0 = arith.cmpi eq, %arg1, %c0_i32 : i32
    %1 = arith.extui %0 : i1 to i32
    %c0_i32_0 = arith.constant 0 : i32
    %2 = arith.cmpi ne, %1, %c0_i32_0 : i32
    scf.if %2 {
      %c0_9 = arith.constant 0 : index
      %c0_10 = arith.constant 0 : index
      %15 = vector.load %arg4[%c0_9, %c0_10] : memref<1x32xf32, #tpu.memory_space<vmem>>, vector<1x32xf32>
      %16 = vector.shape_cast %15 : vector<1x32xf32> to vector<1x32xf32>
      %17 = vector.broadcast %16 : vector<1x32xf32> to vector<64x32xf32>
      %c0_11 = arith.constant 0 : index
      %c0_12 = arith.constant 0 : index
      %18 = vector.load %arg7[%c0_11, %c0_12] : memref<64x32xf32, #tpu.memory_space<vmem>>, vector<64x32xf32>
      tpu.vector_store %arg7[%c0_11, %c0_12], %17 {strides = array<i32>} : memref<64x32xf32, #tpu.memory_space<vmem>>, vector<64x32xf32>,
    } else {
    }
    %c128_i32 = arith.constant 128 : i32
    %3 = arith.muli %arg1, %c128_i32 : i32
    %4 = tpu.assume_multiple %3, 128 : i32
    %c0 = arith.constant 0 : index
    %c0_1 = arith.constant 0 : index
    %5 = vector.load %arg7[%c0, %c0_1] : memref<64x32xf32, #tpu.memory_space<vmem>>, vector<64x32xf32>
    %c0_2 = arith.constant 0 : index
    %c0_3 = arith.constant 0 : index
    %6 = vector.load %arg2[%c0_2, %c0_3] : memref<64x128xf32, #tpu.memory_space<vmem>>, vector<64x128xf32>
    %7 = arith.index_cast %4 : i32 to index
    %c0_4 = arith.constant 0 : index
    %8 = vector.load %arg3[%7, %c0_4] : memref<128x32xf32, #tpu.memory_space<vmem>>, vector<128x32xf32>
    %cst = arith.constant dense<0.000000e+00> : vector<64x32xf32>
    %9 = tpu.matmul %6, %8, %cst {dimension_numbers = #tpu.dot_dimension_numbers<[1], [0], [0], [1], [0, 0, 1, 1], [], []>} : vector<64x128xf32>, vector<128x32xf32>, vector<64x32xf32> -> vector<64x32xf32>
    %10 = arith.addf %5, %9 : vector<64x32xf32>
    %c0_5 = arith.constant 0 : index
    %c0_6 = arith.constant 0 : index
    %11 = vector.load %arg7[%c0_5, %c0_6] : memref<64x32xf32, #tpu.memory_space<vmem>>, vector<64x32xf32>
    tpu.vector_store %arg7[%c0_5, %c0_6], %10 {strides = array<i32>} : memref<64x32xf32, #tpu.memory_space<vmem>>, vector<64x32xf32>,
    %c0_i32_7 = arith.constant 0 : i32
    %12 = arith.cmpi eq, %arg1, %c0_i32_7 : i32
    %13 = arith.extui %12 : i1 to i32
    %c0_i32_8 = arith.constant 0 : i32
    %14 = arith.cmpi ne, %13, %c0_i32_8 : i32
    scf.if %14 {
      %c0_9 = arith.constant 0 : index
      %c0_10 = arith.constant 0 : index
      %15 = vector.load %arg7[%c0_9, %c0_10] : memref<64x32xf32, #tpu.memory_space<vmem>>, vector<64x32xf32>
      %c0_11 = arith.constant 0 : index
      %c0_12 = arith.constant 0 : index
      %16 = vector.load %arg5[%c0_11, %c0_12] : memref<32x128xf32, #tpu.memory_space<vmem>>, vector<32x128xf32>
      %cst_13 = arith.constant dense<0.000000e+00> : vector<64x128xf32>
      %17 = tpu.matmul %15, %16, %cst_13 {dimension_numbers = #tpu.dot_dimension_numbers<[1], [0], [0], [1], [0, 0, 1, 1], [], []>} : vector<64x32xf32>, vector<32x128xf32>, vector<64x128xf32> -> vector<64x128xf32>
      %18 = arith.mulf %15, %15 : vector<64x32xf32>
      %cst_14 = arith.constant dense<0.000000e+00> : vector<64xf32>
      %19 = vector.multi_reduction <add>, %18, %cst_14 [1] : vector<64x32xf32> to vector<64xf32>
      %20 = vector.shape_cast %19 : vector<64xf32> to vector<64x1xf32>
      %cst_15 = arith.constant 2.000000e+00 : f32
      %21 = vector.broadcast %cst_15 : f32 to vector<64x128xf32>
      %22 = arith.mulf %21, %17 : vector<64x128xf32>
      %23 = vector.broadcast %20 : vector<64x1xf32> to vector<64x128xf32>
      %24 = arith.subf %23, %22 : vector<64x128xf32>
      %c0_16 = arith.constant 0 : index
      %c0_17 = arith.constant 0 : index
      %25 = vector.load %arg6[%c0_16, %c0_17] : memref<1x128xf32, #tpu.memory_space<vmem>>, vector<1x128xf32>
      %26 = vector.broadcast %25 : vector<1x128xf32> to vector<64x128xf32>
      %27 = arith.addf %24, %26 : vector<64x128xf32>
      %cst_18 = arith.constant 0.000000e+00 : f32
      %28 = vector.broadcast %cst_18 : f32 to vector<64x128xf32>
      %29 = arith.maximumf %27, %28 : vector<64x128xf32>
      %cst_19 = arith.constant 5.000000e+00 : f32
      %30 = vector.broadcast %cst_19 : f32 to vector<64x128xf32>
      %31 = arith.mulf %29, %30 : vector<64x128xf32>
      %cst_20 = arith.constant 1.000000e+00 : f32
      %32 = vector.broadcast %cst_20 : f32 to vector<64x128xf32>
      %33 = arith.addf %32, %31 : vector<64x128xf32>
      %cst_21 = arith.constant 9.99999993E-9 : f32
      %34 = vector.broadcast %cst_21 : f32 to vector<64x128xf32>
      %35 = arith.addf %33, %34 : vector<64x128xf32>
      %36 = math.log %35 : vector<64x128xf32>
      %37 = tpu.iota {dimensions = array<i32: 1>} : vector<64x128xi32>
      %c8_i32 = arith.constant 8 : i32
      %38 = vector.broadcast %c8_i32 : i32 to vector<64x128xi32>
      %39 = arith.cmpi slt, %37, %38 : vector<64x128xi32>
      %cst_22 = arith.constant 0x7F800000 : f32
      %40 = vector.broadcast %cst_22 : f32 to vector<64x128xf32>
      %41 = arith.select %39, %36, %40 : vector<64x128xi1>, vector<64x128xf32>
      %cst_23 = arith.constant dense<0x7F800000> : vector<64xf32>
      %42 = vector.multi_reduction <minimumf>, %41, %cst_23 [1] : vector<64x128xf32> to vector<64xf32>
      %43 = vector.shape_cast %42 : vector<64xf32> to vector<64x1xf32>
      %44 = vector.broadcast %43 : vector<64x1xf32> to vector<64x128xf32>
      %45 = arith.subf %36, %44 : vector<64x128xf32>
      %cst_24 = arith.constant -1.200000e+00 : f32
      %46 = vector.broadcast %cst_24 : f32 to vector<64x128xf32>
      %47 = arith.mulf %46, %45 : vector<64x128xf32>
      %48 = math.exp %47 : vector<64x128xf32>
      %cst_25 = arith.constant 0.000000e+00 : f32
      %49 = vector.broadcast %cst_25 : f32 to vector<64x128xf32>
      %50 = arith.select %39, %48, %49 : vector<64x128xi1>, vector<64x128xf32>
      %cst_26 = arith.constant dense<0.000000e+00> : vector<64xf32>
      %51 = vector.multi_reduction <add>, %50, %cst_26 [1] : vector<64x128xf32> to vector<64xf32>
      %52 = vector.shape_cast %51 : vector<64xf32> to vector<64x1xf32>
      %53 = vector.broadcast %52 : vector<64x1xf32> to vector<64x128xf32>
      %54 = arith.divf %50, %53 : vector<64x128xf32>
      %c0_27 = arith.constant 0 : index
      %c0_28 = arith.constant 0 : index
      %55 = vector.load %arg8[%c0_27, %c0_28] : memref<64x128xf32, #tpu.memory_space<vmem>>, vector<64x128xf32>
      tpu.vector_store %arg8[%c0_27, %c0_28], %54 {strides = array<i32>} : memref<64x128xf32, #tpu.memory_space<vmem>>, vector<64x128xf32>,
    } else {
    }
    return
  }
  func.func @transform_0(%arg0: i32, %arg1: i32) -> (i32, i32) {
    %c0_i32 = arith.constant 0 : i32
    return %arg0, %arg1 : i32, i32
  }
  func.func @transform_1(%arg0: i32, %arg1: i32) -> (i32, i32) {
    %c0_i32 = arith.constant 0 : i32
    %c0_i32_0 = arith.constant 0 : i32
    %c0_i32_1 = arith.constant 0 : i32
    return %c0_i32, %c0_i32_0 : i32, i32
  }
  func.func @transform_2(%arg0: i32, %arg1: i32) -> (i32, i32) {
    %c0_i32 = arith.constant 0 : i32
    %c0_i32_0 = arith.constant 0 : i32
    %c0_i32_1 = arith.constant 0 : i32
    return %c0_i32, %c0_i32_0 : i32, i32
  }
  func.func @transform_3(%arg0: i32, %arg1: i32) -> (i32, i32) {
    %c0_i32 = arith.constant 0 : i32
    %c0_i32_0 = arith.constant 0 : i32
    %c0_i32_1 = arith.constant 0 : i32
    return %c0_i32, %c0_i32_0 : i32, i32
  }
  func.func @transform_4(%arg0: i32, %arg1: i32) -> (i32, i32) {
    %c0_i32 = arith.constant 0 : i32
    %c0_i32_0 = arith.constant 0 : i32
    %c0_i32_1 = arith.constant 0 : i32
    return %c0_i32, %c0_i32_0 : i32, i32
  }
  func.func @transform_5(%arg0: i32, %arg1: i32) -> (i32, i32) {
    %c0_i32 = arith.constant 0 : i32
    %c0_i32_0 = arith.constant 0 : i32
    return %arg0, %c0_i32 : i32, i32
  }
  func.func @transform_6(%arg0: i32, %arg1: i32) -> (i32, i32) {
    %c0_i32 = arith.constant 0 : i32
    %c0_i32_0 = arith.constant 0 : i32
    return %arg0, %c0_i32 : i32, i32
  }
}

</mosaic_0001>

<llo_original>
// kernel: tpu_custom_call.1
$region0: #{tpu_custom_call.1}
  #allocation0 [shape = 'u32[]', space=smem, size = 0x4, offset = 0x4, fixed_abs, tag = 'smem constant byte address 0x4 - core index']
  #allocation1 [shape = 'u32[144,128]{1,0:T(1,128)}', space=vmem, size = 0x12000, scoped, tag = 'internal scratch']
  %s0 = inlined_call_operand.vmem [shape: f32[128,128], index: 0, kind: input, shape index: {}]
  %s1 = inlined_call_operand.vmem [shape: f32[128,32], index: 1, kind: input, shape index: {}]
  %s2 = inlined_call_operand.vmem [shape: f32[1,32], index: 2, kind: input, shape index: {}]
  %s3 = inlined_call_operand.vmem [shape: f32[32,128], index: 3, kind: input, shape index: {}]
  %s4 = inlined_call_operand.vmem [shape: f32[1,128], index: 4, kind: input, shape index: {}]
  %s5 = inlined_call_operand.vmem [shape: f32[128,32], index: 5, kind: output, shape index: {0}]
  %s6 = inlined_call_operand.hbm [shape: f32[128,128], index: 6, kind: output, shape index: {1}]
  %7 = xla_tuple %s5, %s6
  %s8 = sld [smem:[#allocation0]]
  $region69: #{tpu_custom_call.1} parent=0
    _
  %s10 = ssub.s32 1, %s8
  %s11 = scalar_select 0, %s10, %s8
  $region1: #{tpu_custom_call.1} parent=0
    #allocation2 [shape = 'u8[65536]{0}', space=vmem, size = 0x10000, scoped, tag = 'output window, operand 1']
    #allocation3 [shape = 's32[2]{0}', space=sflag, size = 0x8, scoped, tag = 'scoped memory for tpu_custom_call.1']
    %12 = vsyncpa [#allocation3], 0
    %s13 = scalar_lea.sflag [#allocation3], 1
    %14 = vsyncpa %s13, 0
    loop: start=0, step=1, limit=4
    $region2: #{tpu_custom_call.1} parent=1 // loop_pre_header
      _
    $region3: #{tpu_custom_call.1} parent=1 // loop_header
      %s16 = sphi 0, %s20
      %p17 = scmp.ge.s32.totalorder %s16, 4
      %s23 = sphi 0, %s35
      %s24 = sphi 0, %s31
      %s25 = sphi 0, %s23
      %s26 = sphi 0, %s24
      %s27 = sphi 0, %s25
      %s28 = sphi 0, %s26
      %s40 = sphi 0, %s42
      %s43 = sphi 0, %s40
      %s44 = sphi 0, %s43
      %s60 = sphi 0, %s44
      %s64 = sphi 0, %s64
      %s66 = sphi 0, %s64
      %s67 = sphi 0, %s66
      %s81 = sphi 0, %s67
      %s85 = sphi 0, %s85
      %s87 = sphi 0, %s85
      %s88 = sphi 0, %s87
      %s102 = sphi 0, %s88
      %s106 = sphi 0, %s106
      %s108 = sphi 0, %s106
      %s109 = sphi 0, %s108
      %s123 = sphi 0, %s109
      %s127 = sphi 0, %s127
      %s129 = sphi 0, %s127
      %s130 = sphi 0, %s129
      %s144 = sphi 0, %s130
      %s150 = sphi 0, %s152
      %s153 = sphi 0, %s150
      %s154 = sphi 0, %s153
      %s170 = sphi 0, %s154
      %s176 = sphi 0, %s178
      %s179 = sphi 0, %s176
      %s180 = sphi 0, %s179
      %s196 = sphi 0, %s180
    $region4: #{tpu_custom_call.1} parent=1 // loop_header_branch
      %19 = sbr.rel (%p17) target = $region8
    $region5: #{tpu_custom_call.1} parent=1 // loop_body
      %s21 = ssub.s32 %s16, 1
      %s22 = ssub.s32 %s16, 2
      %s29 = sadd.s32 1, %s24
      %p30 = scmp.ge.s32.totalorder %s29, 1
      %s31 = scalar_select %p30, 0, %s29
      %s32 = sadd.s32 1, %s23
      %s33 = scalar_select %p30, %s32, %s23
      %p34 = scmp.ge.s32.totalorder %s33, 2
      %s35 = scalar_select %p34, 0, %s33
      %s36 = ssub.s32 %s23, %s35
      %s37 = ssub.s32 %s24, %s31
      %s38 = sor.u32 %s36, %s37
      %p39 = scmp.eq.s32.totalorder %s38, 0
      %s41 = sadd.s32 %s40, 1
      %s42 = scalar_select %p39, %s40, %s41
      %p45 = pneg %p39
      %p46 = scmp.eq.s32.totalorder %s16, 1
      %p47 = por %p45, %p46
      %p48 = scmp.ne.s32.totalorder %s40, %s43
      %p49 = scmp.eq.s32.totalorder %s16, 0
      %p50 = por %p48, %p49
      %p51 = scmp.ne.s32.totalorder %s40, %s43
      %p52 = scmp.eq.s32.totalorder %s21, 1
      %p53 = por %p51, %p52
      %p54 = scmp.ne.s32.totalorder %s43, %s44
      %p55 = scmp.eq.s32.totalorder %s21, 0
      %p56 = por %p54, %p55
      %p57 = scmp.ne.s32.totalorder %s43, %s44
      %p58 = scmp.eq.s32.totalorder %s22, 1
      %p59 = por %p57, %p58
      %p61 = scmp.ne.s32.totalorder %s44, %s60
      %p62 = scmp.eq.s32.totalorder %s22, 0
      %p63 = por %p61, %p62
      %s65 = sadd.s32 %s64, 1
      %p68 = scmp.eq.s32.totalorder %s16, 1
      %p69 = scmp.ne.s32.totalorder %s64, %s66
      %p70 = scmp.eq.s32.totalorder %s16, 0
      %p71 = por %p69, %p70
      %p72 = scmp.ne.s32.totalorder %s64, %s66
      %p73 = scmp.eq.s32.totalorder %s21, 1
      %p74 = por %p72, %p73
      %p75 = scmp.ne.s32.totalorder %s66, %s67
      %p76 = scmp.eq.s32.totalorder %s21, 0
      %p77 = por %p75, %p76
      %p78 = scmp.ne.s32.totalorder %s66, %s67
      %p79 = scmp.eq.s32.totalorder %s22, 1
      %p80 = por %p78, %p79
      %p82 = scmp.ne.s32.totalorder %s67, %s81
      %p83 = scmp.eq.s32.totalorder %s22, 0
      %p84 = por %p82, %p83
      %s86 = sadd.s32 %s85, 1
      %p89 = scmp.eq.s32.totalorder %s16, 1
      %p90 = scmp.ne.s32.totalorder %s85, %s87
      %p91 = scmp.eq.s32.totalorder %s16, 0
      %p92 = por %p90, %p91
      %p93 = scmp.ne.s32.totalorder %s85, %s87
      %p94 = scmp.eq.s32.totalorder %s21, 1
      %p95 = por %p93, %p94
      %p96 = scmp.ne.s32.totalorder %s87, %s88
      %p97 = scmp.eq.s32.totalorder %s21, 0
      %p98 = por %p96, %p97
      %p99 = scmp.ne.s32.totalorder %s87, %s88
      %p100 = scmp.eq.s32.totalorder %s22, 1
      %p101 = por %p99, %p100
      %p103 = scmp.ne.s32.totalorder %s88, %s102
      %p104 = scmp.eq.s32.totalorder %s22, 0
      %p105 = por %p103, %p104
      %s107 = sadd.s32 %s106, 1
      %p110 = scmp.eq.s32.totalorder %s16, 1
      %p111 = scmp.ne.s32.totalorder %s106, %s108
      %p112 = scmp.eq.s32.totalorder %s16, 0
      %p113 = por %p111, %p112
      %p114 = scmp.ne.s32.totalorder %s106, %s108
      %p115 = scmp.eq.s32.totalorder %s21, 1
      %p116 = por %p114, %p115
      %p117 = scmp.ne.s32.totalorder %s108, %s109
      %p118 = scmp.eq.s32.totalorder %s21, 0
      %p119 = por %p117, %p118
      %p120 = scmp.ne.s32.totalorder %s108, %s109
      %p121 = scmp.eq.s32.totalorder %s22, 1
      %p122 = por %p120, %p121
      %p124 = scmp.ne.s32.totalorder %s109, %s123
      %p125 = scmp.eq.s32.totalorder %s22, 0
      %p126 = por %p124, %p125
      %s128 = sadd.s32 %s127, 1
      %p131 = scmp.eq.s32.totalorder %s16, 1
      %p132 = scmp.ne.s32.totalorder %s127, %s129
      %p133 = scmp.eq.s32.totalorder %s16, 0
      %p134 = por %p132, %p133
      %p135 = scmp.ne.s32.totalorder %s127, %s129
      %p136 = scmp.eq.s32.totalorder %s21, 1
      %p137 = por %p135, %p136
      %p138 = scmp.ne.s32.totalorder %s129, %s130
      %p139 = scmp.eq.s32.totalorder %s21, 0
      %p140 = por %p138, %p139
      %p141 = scmp.ne.s32.totalorder %s129, %s130
      %p142 = scmp.eq.s32.totalorder %s22, 1
      %p143 = por %p141, %p142
      %p145 = scmp.ne.s32.totalorder %s130, %s144
      %p146 = scmp.eq.s32.totalorder %s22, 0
      %p147 = por %p145, %p146
      %s148 = ssub.s32 %s23, %s35
      %p149 = scmp.eq.s32.totalorder %s148, 0
      %s151 = sadd.s32 %s150, 1
      %s152 = scalar_select %p149, %s150, %s151
      %p155 = pneg %p149
      %p156 = scmp.eq.s32.totalorder %s16, 1
      %p157 = por %p155, %p156
      %p158 = scmp.ne.s32.totalorder %s150, %s153
      %p159 = scmp.eq.s32.totalorder %s16, 0
      %p160 = por %p158, %p159
      %p161 = scmp.ne.s32.totalorder %s150, %s153
      %p162 = scmp.eq.s32.totalorder %s21, 1
      %p163 = por %p161, %p162
      %p164 = scmp.ne.s32.totalorder %s153, %s154
      %p165 = scmp.eq.s32.totalorder %s21, 0
      %p166 = por %p164, %p165
      %p167 = scmp.ne.s32.totalorder %s153, %s154
      %p168 = scmp.eq.s32.totalorder %s22, 1
      %p169 = por %p167, %p168
      %p171 = scmp.ne.s32.totalorder %s154, %s170
      %p172 = scmp.eq.s32.totalorder %s22, 0
      %p173 = por %p171, %p172
      %s174 = ssub.s32 %s23, %s35
      %p175 = scmp.eq.s32.totalorder %s174, 0
      %s177 = sadd.s32 %s176, 1
      %s178 = scalar_select %p175, %s176, %s177
      %p181 = pneg %p175
      %p182 = scmp.eq.s32.totalorder %s16, 1
      %p183 = por %p181, %p182
      %p184 = scmp.ne.s32.totalorder %s176, %s179
      %p185 = scmp.eq.s32.totalorder %s16, 0
      %p186 = por %p184, %p185
      %p187 = scmp.ne.s32.totalorder %s176, %s179
      %p188 = scmp.eq.s32.totalorder %s21, 1
      %p189 = por %p187, %p188
      %p190 = scmp.ne.s32.totalorder %s179, %s180
      %p191 = scmp.eq.s32.totalorder %s21, 0
      %p192 = por %p190, %p191
      %p193 = scmp.ne.s32.totalorder %s179, %s180
      %p194 = scmp.eq.s32.totalorder %s22, 1
      %p195 = por %p193, %p194
      %p197 = scmp.ne.s32.totalorder %s180, %s196
      %p198 = scmp.eq.s32.totalorder %s22, 0
      %p199 = por %p197, %p198
      %p200 = scmp.le.s32.totalorder 1, %s16
      %p201 = scmp.lt.s32.totalorder %s16, 3
      %p202 = pnand %p200, %p201
      %p203 = pneg %p202
      // Predicated region
      $region9: #{tpu_custom_call.1} parent=5 // pred_check
        _
      $region10: #{tpu_custom_call.1} parent=5 // pred_check_branch
        %205 = sbr.rel (%p202) target = $region12
      $region11: #{tpu_custom_call.1} parent=5 // pred_region
        %s206 = ssub.s32 %s16, 1
        // Predicated region
        $region13: #{tpu_custom_call.1} parent=11 // pred_check
          %p207 = pneg %p77
        $region14: #{tpu_custom_call.1} parent=11 // pred_check_branch
          %209 = sbr.rel (%p207) target = $region16
        $region15: #{tpu_custom_call.1} parent=11 // pred_region
          _
        $region16: #{tpu_custom_call.1} parent=11 // pred_fallthru
          _
        // Predicated region
        $region17: #{tpu_custom_call.1} parent=11 // pred_check
          %p210 = pneg %p98
        $region18: #{tpu_custom_call.1} parent=11 // pred_check_branch
          %212 = sbr.rel (%p210) target = $region20
        $region19: #{tpu_custom_call.1} parent=11 // pred_region
          _
        $region20: #{tpu_custom_call.1} parent=11 // pred_fallthru
          _
        // Predicated region
        $region21: #{tpu_custom_call.1} parent=11 // pred_check
          %p213 = pneg %p119
        $region22: #{tpu_custom_call.1} parent=11 // pred_check_branch
          %215 = sbr.rel (%p213) target = $region24
        $region23: #{tpu_custom_call.1} parent=11 // pred_region
          _
        $region24: #{tpu_custom_call.1} parent=11 // pred_fallthru
          _
        // Predicated region
        $region25: #{tpu_custom_call.1} parent=11 // pred_check
          %p216 = pneg %p140
        $region26: #{tpu_custom_call.1} parent=11 // pred_check_branch
          %218 = sbr.rel (%p216) target = $region28
        $region27: #{tpu_custom_call.1} parent=11 // pred_region
          _
        $region28: #{tpu_custom_call.1} parent=11 // pred_fallthru
          _
      $region12: #{tpu_custom_call.1} parent=5 // pred_fallthru
        _
      %p219 = scmp.lt.s32.totalorder %s16, 2
      // Predicated region
      $region29: #{tpu_custom_call.1} parent=5 // pred_check
        %p220 = pneg %p219
      $region30: #{tpu_custom_call.1} parent=5 // pred_check_branch
        %222 = sbr.rel (%p220) target = $region32
      $region31: #{tpu_custom_call.1} parent=5 // pred_region
        // Predicated region
        $region33: #{tpu_custom_call.1} parent=31 // pred_check
          %p223 = pneg %p50
        $region34: #{tpu_custom_call.1} parent=31 // pred_check_branch
          %225 = sbr.rel (%p223) target = $region36
        $region35: #{tpu_custom_call.1} parent=31 // pred_region
          %s226 = smul.u32 8, %s23
          %p227 = scmp.lt.s32.totalorder %s226, 15
          %s228 = scalar_select %p227, %s226, 15
          %p229 = scmp.lt.s32.totalorder %s24, 0
          %s230 = scalar_select %p229, %s24, 0
          %s231 = sadd.s32 %s230, %s228
          %s232 = smul.addr %s231, 8
          %s233 = scalar_lea.vmem %s0, %s232
          %s234 = smul.u32 8, %s23
        $region36: #{tpu_custom_call.1} parent=31 // pred_fallthru
          _
      $region32: #{tpu_custom_call.1} parent=5 // pred_fallthru
        _
      %p235 = scmp.le.s32.totalorder 1, %s16
      %p236 = scmp.lt.s32.totalorder %s16, 3
      %p237 = pnand %p235, %p236
      %p238 = pneg %p237
      // Predicated region
      $region37: #{tpu_custom_call.1} parent=5 // pred_check
        _
      $region38: #{tpu_custom_call.1} parent=5 // pred_check_branch
        %240 = sbr.rel (%p237) target = $region40
      $region39: #{tpu_custom_call.1} parent=5 // pred_region
        %s241 = ssub.s32 %s16, 1
        %s242 = smul.u32 8, %s25
        %p243 = scmp.lt.s32.totalorder %s242, 15
        %s244 = scalar_select %p243, %s242, 15
        %p245 = scmp.lt.s32.totalorder %s26, 0
        %s246 = scalar_select %p245, %s26, 0
        %s247 = sadd.s32 %s246, %s244
        %s248 = smul.addr %s247, 8
        %s249 = scalar_lea.vmem %s0, %s248
        %p250 = pneg %p56
        %p251 = pneg %p53
        %p252 = pneg %p77
        %p253 = pneg %p74
        %p254 = pneg %p98
        %p255 = pneg %p95
        %p256 = pneg %p119
        %p257 = pneg %p116
        %p258 = pneg %p140
        %p259 = pneg %p137
        %p260 = pneg %p166
        %p261 = pneg %p163
        %s262 = smul.u32 8, %s25
        %p263 = scmp.lt.s32.totalorder %s262, 15
        %s264 = scalar_select %p263, %s262, 15
        %s265 = smul.addr %s264, 8
        %s266 = scalar_lea.vmem %s5, %s265
        %p267 = pneg %p192
        %p268 = pneg %p189
        %s269 = sand.u32 %s179, 1
        %s270 = scalar_lea.sflag [#allocation3], %s269
        %s271 = sand.u32 %s179, 1
        %s272 = smul.addr %s271, 64
        %s273 = scalar_lea.vmem [#allocation2], %s272
        %s274 = smul.u32 8, %s25
        %p275 = scmp.lt.s32.totalorder %s274, 15
        %s276 = scalar_select %p275, %s274, 15
        %p277 = scmp.lt.s32.totalorder %s26, 0
        %s278 = scalar_select %p277, %s26, 0
        %s279 = sadd.s32 %s278, %s276
        %s280 = smul.addr %s279, 8
        %s281 = scalar_lea.vmem %s0, %s280
        %s282 = smul.u32 8, %s25
        %s283 = smul.u32 8, %s25
        %p284 = scmp.lt.s32.totalorder %s283, 15
        %s285 = scalar_select %p284, %s283, 15
        %s286 = smul.addr %s285, 8
        %s287 = scalar_lea.vmem %s5, %s286
        %s288 = smul.u32 8, %s25
        %s289 = smul.u32 8, %s25
        %p290 = scmp.eq.s32.totalorder %s26, 0
        // Predicated region
        $region41: #{tpu_custom_call.1} parent=39 // pred_check
          %p291 = pneg %p290
        $region42: #{tpu_custom_call.1} parent=39 // pred_check_branch
          %293 = sbr.rel (%p291) target = $region44
        $region43: #{tpu_custom_call.1} parent=39 // pred_region
          %v294 = vld [vmem:[%s2] sm:$0x1]
          %v296 = vlaneseq
          %v297 = vshrl.u32 %v296, 7
          %v298 = vsub.s32 0, %v297
          %v299 = vrot.slane %v294, %v298
          %vm301 = vcmask 261120
          %302 = vst.msk [vmem:[%s287] sm:$0xff] %vm301, %v299
          %303 = vst.msk [vmem:[%s287 + $0x8] sm:$0xff] %vm301, %v299
          %304 = vst.msk [vmem:[%s287 + $0x10] sm:$0xff] %vm301, %v299
          %305 = vst.msk [vmem:[%s287 + $0x18] sm:$0xff] %vm301, %v299
          %306 = vst.msk [vmem:[%s287 + $0x20] sm:$0xff] %vm301, %v299
          %307 = vst.msk [vmem:[%s287 + $0x28] sm:$0xff] %vm301, %v299
          %308 = vst.msk [vmem:[%s287 + $0x30] sm:$0xff] %vm301, %v299
          %309 = vst.msk [vmem:[%s287 + $0x38] sm:$0xff] %vm301, %v299
        $region44: #{tpu_custom_call.1} parent=39 // pred_fallthru
          _
        %s310 = smul.u32 %s26, 128
        %v311 = vld [vmem:[%s287] sm:$0xff]
        %v312 = vld [vmem:[%s287 + $0x8] sm:$0xff]
        %v313 = vld [vmem:[%s287 + $0x10] sm:$0xff]
        %v314 = vld [vmem:[%s287 + $0x18] sm:$0xff]
        %v315 = vld [vmem:[%s287 + $0x20] sm:$0xff]
        %v316 = vld [vmem:[%s287 + $0x28] sm:$0xff]
        %v317 = vld [vmem:[%s287 + $0x30] sm:$0xff]
        %v318 = vld [vmem:[%s287 + $0x38] sm:$0xff]
        %v319 = vld [vmem:[%s281] sm:$0xff]
        %v320 = vld [vmem:[%s281 + $0x8] sm:$0xff]
        %v321 = vld [vmem:[%s281 + $0x10] sm:$0xff]
        %v322 = vld [vmem:[%s281 + $0x18] sm:$0xff]
        %v323 = vld [vmem:[%s281 + $0x20] sm:$0xff]
        %v324 = vld [vmem:[%s281 + $0x28] sm:$0xff]
        %v325 = vld [vmem:[%s281 + $0x30] sm:$0xff]
        %v326 = vld [vmem:[%s281 + $0x38] sm:$0xff]
        %s327 = scalar_lea.vmem %s1, %s310
        %v328 = vld [vmem:[%s327] sm:$0xff]
        %v329 = vld [vmem:[%s327 + $0x8] sm:$0xff]
        %v330 = vld [vmem:[%s327 + $0x10] sm:$0xff]
        %v331 = vld [vmem:[%s327 + $0x18] sm:$0xff]
        %v332 = vld [vmem:[%s327 + $0x20] sm:$0xff]
        %v333 = vld [vmem:[%s327 + $0x28] sm:$0xff]
        %v334 = vld [vmem:[%s327 + $0x30] sm:$0xff]
        %v335 = vld [vmem:[%s327 + $0x38] sm:$0xff]
        %v336 = vld [vmem:[%s327 + $0x40] sm:$0xff]
        %v337 = vld [vmem:[%s327 + $0x48] sm:$0xff]
        %v338 = vld [vmem:[%s327 + $0x50] sm:$0xff]
        %v339 = vld [vmem:[%s327 + $0x58] sm:$0xff]
        %v340 = vld [vmem:[%s327 + $0x60] sm:$0xff]
        %v341 = vld [vmem:[%s327 + $0x68] sm:$0xff]
        %v342 = vld [vmem:[%s327 + $0x70] sm:$0xff]
        %v343 = vld [vmem:[%s327 + $0x78] sm:$0xff]
        %344 = vmatprep.subr.mxu0 0.0
        %345 = vmatpush1.msra.mxu0 %v328
        %346 = vmatprep.subr.mxu0 0.0
        %347 = vmatpush1.msra.mxu0 %v329
        %348 = vmatprep.subr.mxu0 0.0
        %349 = vmatpush1.msra.mxu0 %v330
        %350 = vmatprep.subr.mxu0 0.0
        %351 = vmatpush1.msra.mxu0 %v331
        %352 = vmatprep.subr.mxu0 0.0
        %353 = vmatpush1.msra.mxu0 %v332
        %354 = vmatprep.subr.mxu0 0.0
        %355 = vmatpush1.msra.mxu0 %v333
        %356 = vmatprep.subr.mxu0 0.0
        %357 = vmatpush1.msra.mxu0 %v334
        %358 = vmatprep.subr.mxu0 0.0
        %359 = vmatpush1.msra.mxu0 %v335
        %360 = vmatprep.subr.mxu0 0.0
        %361 = vmatpush1.msra.mxu0 %v336
        %362 = vmatprep.subr.mxu0 0.0
        %363 = vmatpush1.msra.mxu0 %v337
        %364 = vmatprep.subr.mxu0 0.0
        %365 = vmatpush1.msra.mxu0 %v338
        %366 = vmatprep.subr.mxu0 0.0
        %367 = vmatpush1.msra.mxu0 %v339
        %368 = vmatprep.subr.mxu0 0.0
        %369 = vmatpush1.msra.mxu0 %v340
        %370 = vmatprep.subr.mxu0 0.0
        %371 = vmatpush1.msra.mxu0 %v341
        %372 = vmatprep.subr.mxu0 0.0
        %373 = vmatpush1.msra.mxu0 %v342
        %374 = vmatprep.subr.mxu0 0.0
        %375 = vmatpush1.msra.mxu0 %v343
        %376 = vmatprep.subr.mxu0 0.0
        %377 = vmatpush1.msra.mxu0 0.0
        %378 = vmatprep.subr.mxu0 0.0
        %379 = vmatpush1.msra.mxu0 0.0
        %380 = vmatprep.subr.mxu0 0.0
        %381 = vmatpush1.msra.mxu0 0.0
        %382 = vmatprep.subr.mxu0 0.0
        %383 = vmatpush1.msra.mxu0 0.0
        %384 = vmatprep.subr.mxu0 0.0
        %385 = vmatpush1.msra.mxu0 0.0
        %386 = vmatprep.subr.mxu0 0.0
        %387 = vmatpush1.msra.mxu0 0.0
        %388 = vmatprep.subr.mxu0 0.0
        %389 = vmatpush1.msra.mxu0 0.0
        %390 = vmatprep.subr.mxu0 0.0
        %391 = vmatpush1.msra.mxu0 0.0
        %392 = vmatprep.subr.mxu0 0.0
        %393 = vmatpush1.msra.mxu0 0.0
        %394 = vmatprep.subr.mxu0 0.0
        %395 = vmatpush1.msra.mxu0 0.0
        %396 = vmatprep.subr.mxu0 0.0
        %397 = vmatpush1.msra.mxu0 0.0
        %398 = vmatprep.subr.mxu0 0.0
        %399 = vmatpush1.msra.mxu0 0.0
        %400 = vmatprep.subr.mxu0 0.0
        %401 = vmatpush1.msra.mxu0 0.0
        %402 = vmatprep.subr.mxu0 0.0
        %403 = vmatpush1.msra.mxu0 0.0
        %404 = vmatprep.subr.mxu0 0.0
        %405 = vmatpush1.msra.mxu0 0.0
        %406 = vmatprep.subr.mxu0 0.0
        %407 = vmatpush1.msra.mxu0 0.0
        %408 = vmatprep.mubr.f32.mxu0 0.0
        %409 = vmatmul.mubr.f32.gmra.mrb[0].mxu0 %v319
        %v410 = vpop.f32.mrb[0].mxu0
        %v411 = vadd.f32 0.0, %v410
        %v412 = vpop.f32.mrb[0].mxu0
        %413 = vmatprep.mubr.f32.mxu0 0.0
        %414 = vmatmul.mubr.f32.gmra.mrb[0].mxu0 %v320
        %v415 = vpop.f32.mrb[0].mxu0
        %v416 = vadd.f32 0.0, %v415
        %v417 = vpop.f32.mrb[0].mxu0
        %418 = vmatprep.mubr.f32.mxu0 0.0
        %419 = vmatmul.mubr.f32.gmra.mrb[0].mxu0 %v321
        %v420 = vpop.f32.mrb[0].mxu0
        %v421 = vadd.f32 0.0, %v420
        %v422 = vpop.f32.mrb[0].mxu0
        %423 = vmatprep.mubr.f32.mxu0 0.0
        %424 = vmatmul.mubr.f32.gmra.mrb[0].mxu0 %v322
        %v425 = vpop.f32.mrb[0].mxu0
        %v426 = vadd.f32 0.0, %v425
        %v427 = vpop.f32.mrb[0].mxu0
        %428 = vmatprep.mubr.f32.mxu0 0.0
        %429 = vmatmul.mubr.f32.gmra.mrb[0].mxu0 %v323
        %v430 = vpop.f32.mrb[0].mxu0
        %v431 = vadd.f32 0.0, %v430
        %v432 = vpop.f32.mrb[0].mxu0
        %433 = vmatprep.mubr.f32.mxu0 0.0
        %434 = vmatmul.mubr.f32.gmra.mrb[0].mxu0 %v324
        %v435 = vpop.f32.mrb[0].mxu0
        %v436 = vadd.f32 0.0, %v435
        %v437 = vpop.f32.mrb[0].mxu0
        %438 = vmatprep.mubr.f32.mxu0 0.0
        %439 = vmatmul.mubr.f32.gmra.mrb[0].mxu0 %v325
        %v440 = vpop.f32.mrb[0].mxu0
        %v441 = vadd.f32 0.0, %v440
        %v442 = vpop.f32.mrb[0].mxu0
        %443 = vmatprep.mubr.f32.mxu0 0.0
        %444 = vmatmul.mubr.f32.gmra.mrb[0].mxu0 %v326
        %v445 = vpop.f32.mrb[0].mxu0
        %v446 = vadd.f32 0.0, %v445
        %v447 = vpop.f32.mrb[0].mxu0
        %448 = vdwg.mxu0
        %v449 = vadd.f32 %v311, %v411
        %v450 = vadd.f32 %v312, %v416
        %v451 = vadd.f32 %v313, %v421
        %v452 = vadd.f32 %v314, %v426
        %v453 = vadd.f32 %v315, %v431
        %v454 = vadd.f32 %v316, %v436
        %v455 = vadd.f32 %v317, %v441
        %v456 = vadd.f32 %v318, %v446
        %vm457 = vcmask 261120
        %458 = vst.msk [vmem:[%s287] sm:$0xff] %vm457, %v449
        %459 = vst.msk [vmem:[%s287 + $0x8] sm:$0xff] %vm457, %v450
        %460 = vst.msk [vmem:[%s287 + $0x10] sm:$0xff] %vm457, %v451
        %461 = vst.msk [vmem:[%s287 + $0x18] sm:$0xff] %vm457, %v452
        %462 = vst.msk [vmem:[%s287 + $0x20] sm:$0xff] %vm457, %v453
        %463 = vst.msk [vmem:[%s287 + $0x28] sm:$0xff] %vm457, %v454
        %464 = vst.msk [vmem:[%s287 + $0x30] sm:$0xff] %vm457, %v455
        %465 = vst.msk [vmem:[%s287 + $0x38] sm:$0xff] %vm457, %v456
        // Predicated region
        $region45: #{tpu_custom_call.1} parent=39 // pred_check
          %p466 = pneg %p290
        $region46: #{tpu_custom_call.1} parent=39 // pred_check_branch
          %468 = sbr.rel (%p466) target = $region48
        $region47: #{tpu_custom_call.1} parent=39 // pred_region
          %v469 = vld [vmem:[%s287] sm:$0xff]
          %v470 = vld [vmem:[%s287 + $0x8] sm:$0xff]
          %v471 = vld [vmem:[%s287 + $0x10] sm:$0xff]
          %v472 = vld [vmem:[%s287 + $0x18] sm:$0xff]
          %v473 = vld [vmem:[%s287 + $0x20] sm:$0xff]
          %v474 = vld [vmem:[%s287 + $0x28] sm:$0xff]
          %v475 = vld [vmem:[%s287 + $0x30] sm:$0xff]
          %v476 = vld [vmem:[%s287 + $0x38] sm:$0xff]
          %v477 = vld [vmem:[%s3] sm:$0xff]
          %v478 = vld [vmem:[%s3 + $0x8] sm:$0xff]
          %v479 = vld [vmem:[%s3 + $0x10] sm:$0xff]
          %v480 = vld [vmem:[%s3 + $0x18] sm:$0xff]
          %v482 = vsel %vm457, %v469, 0
          %v485 = vsel %vm457, %v470, 0
          %v488 = vsel %vm457, %v471, 0
          %v491 = vsel %vm457, %v472, 0
          %v494 = vsel %vm457, %v473, 0
          %v497 = vsel %vm457, %v474, 0
          %v500 = vsel %vm457, %v475, 0
          %v503 = vsel %vm457, %v476, 0
          %505 = vmatprep.subr.mxu0 0.0
          %506 = vmatpush1.msra.mxu0 %v477
          %507 = vmatprep.subr.mxu0 0.0
          %508 = vmatpush1.msra.mxu0 %v478
          %509 = vmatprep.subr.mxu0 0.0
          %510 = vmatpush1.msra.mxu0 %v479
          %511 = vmatprep.subr.mxu0 0.0
          %512 = vmatpush1.msra.mxu0 %v480
          %513 = vmatprep.subr.mxu0 0.0
          %514 = vmatpush1.msra.mxu0 0.0
          %515 = vmatprep.subr.mxu0 0.0
          %516 = vmatpush1.msra.mxu0 0.0
          %517 = vmatprep.subr.mxu0 0.0
          %518 = vmatpush1.msra.mxu0 0.0
          %519 = vmatprep.subr.mxu0 0.0
          %520 = vmatpush1.msra.mxu0 0.0
          %521 = vmatprep.subr.mxu0 0.0
          %522 = vmatpush1.msra.mxu0 0.0
          %523 = vmatprep.subr.mxu0 0.0
          %524 = vmatpush1.msra.mxu0 0.0
          %525 = vmatprep.subr.mxu0 0.0
          %526 = vmatpush1.msra.mxu0 0.0
          %527 = vmatprep.subr.mxu0 0.0
          %528 = vmatpush1.msra.mxu0 0.0
          %529 = vmatprep.subr.mxu0 0.0
          %530 = vmatpush1.msra.mxu0 0.0
          %531 = vmatprep.subr.mxu0 0.0
          %532 = vmatpush1.msra.mxu0 0.0
          %533 = vmatprep.subr.mxu0 0.0
          %534 = vmatpush1.msra.mxu0 0.0
          %535 = vmatprep.subr.mxu0 0.0
          %536 = vmatpush1.msra.mxu0 0.0
          %537 = vmatprep.subr.mxu0 0.0
          %538 = vmatpush1.msra.mxu0 0.0
          %539 = vmatprep.subr.mxu0 0.0
          %540 = vmatpush1.msra.mxu0 0.0
          %541 = vmatprep.subr.mxu0 0.0
          %542 = vmatpush1.msra.mxu0 0.0
          %543 = vmatprep.subr.mxu0 0.0
          %544 = vmatpush1.msra.mxu0 0.0
          %545 = vmatprep.subr.mxu0 0.0
          %546 = vmatpush1.msra.mxu0 0.0
          %547 = vmatprep.subr.mxu0 0.0
          %548 = vmatpush1.msra.mxu0 0.0
          %549 = vmatprep.subr.mxu0 0.0
          %550 = vmatpush1.msra.mxu0 0.0
          %551 = vmatprep.subr.mxu0 0.0
          %552 = vmatpush1.msra.mxu0 0.0
          %553 = vmatprep.subr.mxu0 0.0
          %554 = vmatpush1.msra.mxu0 0.0
          %555 = vmatprep.subr.mxu0 0.0
          %556 = vmatpush1.msra.mxu0 0.0
          %557 = vmatprep.subr.mxu0 0.0
          %558 = vmatpush1.msra.mxu0 0.0
          %559 = vmatprep.subr.mxu0 0.0
          %560 = vmatpush1.msra.mxu0 0.0
          %561 = vmatprep.subr.mxu0 0.0
          %562 = vmatpush1.msra.mxu0 0.0
          %563 = vmatprep.subr.mxu0 0.0
          %564 = vmatpush1.msra.mxu0 0.0
          %565 = vmatprep.subr.mxu0 0.0
          %566 = vmatpush1.msra.mxu0 0.0
          %567 = vmatprep.subr.mxu0 0.0
          %568 = vmatpush1.msra.mxu0 0.0
          %569 = vmatprep.mubr.f32.mxu0 0.0
          %570 = vmatmul.mubr.f32.gmra.mrb[0].mxu0 %v482
          %v571 = vpop.f32.mrb[0].mxu0
          %v572 = vadd.f32 0.0, %v571
          %v573 = vpop.f32.mrb[0].mxu0
          %574 = vmatprep.mubr.f32.mxu0 0.0
          %575 = vmatmul.mubr.f32.gmra.mrb[0].mxu0 %v485
          %v576 = vpop.f32.mrb[0].mxu0
          %v577 = vadd.f32 0.0, %v576
          %v578 = vpop.f32.mrb[0].mxu0
          %579 = vmatprep.mubr.f32.mxu0 0.0
          %580 = vmatmul.mubr.f32.gmra.mrb[0].mxu0 %v488
          %v581 = vpop.f32.mrb[0].mxu0
          %v582 = vadd.f32 0.0, %v581
          %v583 = vpop.f32.mrb[0].mxu0
          %584 = vmatprep.mubr.f32.mxu0 0.0
          %585 = vmatmul.mubr.f32.gmra.mrb[0].mxu0 %v491
          %v586 = vpop.f32.mrb[0].mxu0
          %v587 = vadd.f32 0.0, %v586
          %v588 = vpop.f32.mrb[0].mxu0
          %589 = vmatprep.mubr.f32.mxu0 0.0
          %590 = vmatmul.mubr.f32.gmra.mrb[0].mxu0 %v494
          %v591 = vpop.f32.mrb[0].mxu0
          %v592 = vadd.f32 0.0, %v591
          %v593 = vpop.f32.mrb[0].mxu0
          %594 = vmatprep.mubr.f32.mxu0 0.0
          %595 = vmatmul.mubr.f32.gmra.mrb[0].mxu0 %v497
          %v596 = vpop.f32.mrb[0].mxu0
          %v597 = vadd.f32 0.0, %v596
          %v598 = vpop.f32.mrb[0].mxu0
          %599 = vmatprep.mubr.f32.mxu0 0.0
          %600 = vmatmul.mubr.f32.gmra.mrb[0].mxu0 %v500
          %v601 = vpop.f32.mrb[0].mxu0
          %v602 = vadd.f32 0.0, %v601
          %v603 = vpop.f32.mrb[0].mxu0
          %604 = vmatprep.mubr.f32.mxu0 0.0
          %605 = vmatmul.mubr.f32.gmra.mrb[0].mxu0 %v503
          %v606 = vpop.f32.mrb[0].mxu0
          %v607 = vadd.f32 0.0, %v606
          %v608 = vpop.f32.mrb[0].mxu0
          %609 = vdwg.mxu0
          %v610 = vmul.f32 %v469, %v469
          %v611 = vmul.f32 %v470, %v470
          %v612 = vmul.f32 %v471, %v471
          %v613 = vmul.f32 %v472, %v472
          %v614 = vmul.f32 %v473, %v473
          %v615 = vmul.f32 %v474, %v474
          %v616 = vmul.f32 %v475, %v475
          %v617 = vmul.f32 %v476, %v476
          %v618 = vsel %vm457, %v610, 0.0
          %619 = vadd.xlane.f32.xlu0 %v618
          %v620 = vpop.xlane.xlu0 %619
          %v621 = vsel %vm457, %v611, 0.0
          %622 = vadd.xlane.f32.xlu0 %v621
          %v623 = vpop.xlane.xlu0 %622
          %v624 = vsel %vm457, %v612, 0.0
          %625 = vadd.xlane.f32.xlu0 %v624
          %v626 = vpop.xlane.xlu0 %625
          %v627 = vsel %vm457, %v613, 0.0
          %628 = vadd.xlane.f32.xlu0 %v627
          %v629 = vpop.xlane.xlu0 %628
          %v630 = vsel %vm457, %v614, 0.0
          %631 = vadd.xlane.f32.xlu0 %v630
          %v632 = vpop.xlane.xlu0 %631
          %v633 = vsel %vm457, %v615, 0.0
          %634 = vadd.xlane.f32.xlu0 %v633
          %v635 = vpop.xlane.xlu0 %634
          %v636 = vsel %vm457, %v616, 0.0
          %637 = vadd.xlane.f32.xlu0 %v636
          %v638 = vpop.xlane.xlu0 %637
          %v639 = vsel %vm457, %v617, 0.0
          %640 = vadd.xlane.f32.xlu0 %v639
          %v641 = vpop.xlane.xlu0 %640
          %v642 = vmul.f32 %v572, 2.0
          %v643 = vmul.f32 %v577, 2.0
          %v644 = vmul.f32 %v582, 2.0
          %v645 = vmul.f32 %v587, 2.0
          %v646 = vmul.f32 %v592, 2.0
          %v647 = vmul.f32 %v597, 2.0
          %v648 = vmul.f32 %v602, 2.0
          %v649 = vmul.f32 %v607, 2.0
          %v650 = vsub.f32 %v620, %v642
          %v651 = vsub.f32 %v623, %v643
          %v652 = vsub.f32 %v626, %v644
          %v653 = vsub.f32 %v629, %v645
          %v654 = vsub.f32 %v632, %v646
          %v655 = vsub.f32 %v635, %v647
          %v656 = vsub.f32 %v638, %v648
          %v657 = vsub.f32 %v641, %v649
          %v658 = vld [vmem:[%s4] sm:$0x1]
          %v660 = vlaneseq
          %v661 = vshrl.u32 %v660, 7
          %v662 = vsub.s32 0, %v661
          %v663 = vrot.slane %v658, %v662
          %v665 = vadd.f32 %v650, %v663
          %v666 = vadd.f32 %v651, %v663
          %v667 = vadd.f32 %v652, %v663
          %v668 = vadd.f32 %v653, %v663
          %v669 = vadd.f32 %v654, %v663
          %v670 = vadd.f32 %v655, %v663
          %v671 = vadd.f32 %v656, %v663
          %v672 = vadd.f32 %v657, %v663
          %v673 = vmax.f32 %v665, 0.0
          %v674 = vmax.f32 %v666, 0.0
          %v675 = vmax.f32 %v667, 0.0
          %v676 = vmax.f32 %v668, 0.0
          %v677 = vmax.f32 %v669, 0.0
          %v678 = vmax.f32 %v670, 0.0
          %v679 = vmax.f32 %v671, 0.0
          %v680 = vmax.f32 %v672, 0.0
          %v681 = vmul.f32 %v673, 5.0
          %v682 = vmul.f32 %v674, 5.0
          %v683 = vmul.f32 %v675, 5.0
          %v684 = vmul.f32 %v676, 5.0
          %v685 = vmul.f32 %v677, 5.0
          %v686 = vmul.f32 %v678, 5.0
          %v687 = vmul.f32 %v679, 5.0
          %v688 = vmul.f32 %v680, 5.0
          %v689 = vadd.f32 %v681, 1.0
          %v690 = vadd.f32 %v682, 1.0
          %v691 = vadd.f32 %v683, 1.0
          %v692 = vadd.f32 %v684, 1.0
          %v693 = vadd.f32 %v685, 1.0
          %v694 = vadd.f32 %v686, 1.0
          %v695 = vadd.f32 %v687, 1.0
          %v696 = vadd.f32 %v688, 1.0
          %v697 = vadd.f32 %v689, 1e-08
          %v698 = vadd.f32 %v690, 1e-08
          %v699 = vadd.f32 %v691, 1e-08
          %v700 = vadd.f32 %v692, 1e-08
          %v701 = vadd.f32 %v693, 1e-08
          %v702 = vadd.f32 %v694, 1e-08
          %v703 = vadd.f32 %v695, 1e-08
          %v704 = vadd.f32 %v696, 1e-08
          %v705 = vlog2.pop %v697
          %v706 = vmul.f32 %v705, 0.6931472
          %v707 = vlog2.pop %v698
          %v708 = vmul.f32 %v707, 0.6931472
          %v709 = vlog2.pop %v699
          %v710 = vmul.f32 %v709, 0.6931472
          %v711 = vlog2.pop %v700
          %v712 = vmul.f32 %v711, 0.6931472
          %v713 = vlog2.pop %v701
          %v714 = vmul.f32 %v713, 0.6931472
          %v715 = vlog2.pop %v702
          %v716 = vmul.f32 %v715, 0.6931472
          %v717 = vlog2.pop %v703
          %v718 = vmul.f32 %v717, 0.6931472
          %v719 = vlog2.pop %v704
          %v720 = vmul.f32 %v719, 0.6931472
          %v721 = vlaneseq
          %v722 = vand.u32 %v721, 127
          %vm723 = vcmp.lt.s32.totalorder %v722, 8
          %v724 = vsel %vm723, %v706, inf
          %v725 = vsel %vm723, %v708, inf
          %v726 = vsel %vm723, %v710, inf
          %v727 = vsel %vm723, %v712, inf
          %v728 = vsel %vm723, %v714, inf
          %v729 = vsel %vm723, %v716, inf
          %v730 = vsel %vm723, %v718, inf
          %v731 = vsel %vm723, %v720, inf
          %732 = vmin.xlane.f32.xlu0 %v724
          %v733 = vpop.xlane.xlu0 %732
          %734 = vmin.xlane.f32.xlu0 %v725
          %v735 = vpop.xlane.xlu0 %734
          %736 = vmin.xlane.f32.xlu0 %v726
          %v737 = vpop.xlane.xlu0 %736
          %738 = vmin.xlane.f32.xlu0 %v727
          %v739 = vpop.xlane.xlu0 %738
          %740 = vmin.xlane.f32.xlu0 %v728
          %v741 = vpop.xlane.xlu0 %740
          %742 = vmin.xlane.f32.xlu0 %v729
          %v743 = vpop.xlane.xlu0 %742
          %744 = vmin.xlane.f32.xlu0 %v730
          %v745 = vpop.xlane.xlu0 %744
          %746 = vmin.xlane.f32.xlu0 %v731
          %v747 = vpop.xlane.xlu0 %746
          %v748 = vsub.f32 %v706, %v733
          %v749 = vsub.f32 %v708, %v735
          %v750 = vsub.f32 %v710, %v737
          %v751 = vsub.f32 %v712, %v739
          %v752 = vsub.f32 %v714, %v741
          %v753 = vsub.f32 %v716, %v743
          %v754 = vsub.f32 %v718, %v745
          %v755 = vsub.f32 %v720, %v747
          %v756 = vmul.f32 %v748, -1.2
          %v757 = vmul.f32 %v749, -1.2
          %v758 = vmul.f32 %v750, -1.2
          %v759 = vmul.f32 %v751, -1.2
          %v760 = vmul.f32 %v752, -1.2
          %v761 = vmul.f32 %v753, -1.2
          %v762 = vmul.f32 %v754, -1.2
          %v763 = vmul.f32 %v755, -1.2
          %v764 = vmul.f32 %v756, 1.442695
          %v765 = vpow.pop %v764
          %v766 = vmul.f32 %v757, 1.442695
          %v767 = vpow.pop %v766
          %v768 = vmul.f32 %v758, 1.442695
          %v769 = vpow.pop %v768
          %v770 = vmul.f32 %v759, 1.442695
          %v771 = vpow.pop %v770
          %v772 = vmul.f32 %v760, 1.442695
          %v773 = vpow.pop %v772
          %v774 = vmul.f32 %v761, 1.442695
          %v775 = vpow.pop %v774
          %v776 = vmul.f32 %v762, 1.442695
          %v777 = vpow.pop %v776
          %v778 = vmul.f32 %v763, 1.442695
          %v779 = vpow.pop %v778
          %v780 = vsel %vm723, %v765, 0.0
          %v781 = vsel %vm723, %v767, 0.0
          %v782 = vsel %vm723, %v769, 0.0
          %v783 = vsel %vm723, %v771, 0.0
          %v784 = vsel %vm723, %v773, 0.0
          %v785 = vsel %vm723, %v775, 0.0
          %v786 = vsel %vm723, %v777, 0.0
          %v787 = vsel %vm723, %v779, 0.0
          %788 = vadd.xlane.f32.xlu0 %v780
          %v789 = vpop.xlane.xlu0 %788
          %790 = vadd.xlane.f32.xlu0 %v781
          %v791 = vpop.xlane.xlu0 %790
          %792 = vadd.xlane.f32.xlu0 %v782
          %v793 = vpop.xlane.xlu0 %792
          %794 = vadd.xlane.f32.xlu0 %v783
          %v795 = vpop.xlane.xlu0 %794
          %796 = vadd.xlane.f32.xlu0 %v784
          %v797 = vpop.xlane.xlu0 %796
          %798 = vadd.xlane.f32.xlu0 %v785
          %v799 = vpop.xlane.xlu0 %798
          %800 = vadd.xlane.f32.xlu0 %v786
          %v801 = vpop.xlane.xlu0 %800
          %802 = vadd.xlane.f32.xlu0 %v787
          %v803 = vpop.xlane.xlu0 %802
          %v804 = vrcp.pop %v789
          %v805 = vmul.f32 %v780, %v804
          %v806 = vrcp.pop %v791
          %v807 = vmul.f32 %v781, %v806
          %v808 = vrcp.pop %v793
          %v809 = vmul.f32 %v782, %v808
          %v810 = vrcp.pop %v795
          %v811 = vmul.f32 %v783, %v810
          %v812 = vrcp.pop %v797
          %v813 = vmul.f32 %v784, %v812
          %v814 = vrcp.pop %v799
          %v815 = vmul.f32 %v785, %v814
          %v816 = vrcp.pop %v801
          %v817 = vmul.f32 %v786, %v816
          %v818 = vrcp.pop %v803
          %v819 = vmul.f32 %v787, %v818
          %820 = vst [vmem:[%s273] sm:$0xff] %v805
          %821 = vst [vmem:[%s273 + $0x8] sm:$0xff] %v807
          %822 = vst [vmem:[%s273 + $0x10] sm:$0xff] %v809
          %823 = vst [vmem:[%s273 + $0x18] sm:$0xff] %v811
          %824 = vst [vmem:[%s273 + $0x20] sm:$0xff] %v813
          %825 = vst [vmem:[%s273 + $0x28] sm:$0xff] %v815
          %826 = vst [vmem:[%s273 + $0x30] sm:$0xff] %v817
          %827 = vst [vmem:[%s273 + $0x38] sm:$0xff] %v819
        $region48: #{tpu_custom_call.1} parent=39 // pred_fallthru
          _
        %s828 = smul.u32 8, %s25
        %p829 = scmp.lt.s32.totalorder %s828, 15
        %s830 = scalar_select %p829, %s828, 15
        %s831 = smul.addr %s830, 8
        %s832 = scalar_lea.vmem %s5, %s831
        %s833 = sand.u32 %s179, 1
        %s834 = scalar_lea.sflag [#allocation3], %s833
        %s835 = sand.u32 %s179, 1
        %s836 = smul.addr %s835, 64
        %s837 = scalar_lea.vmem [#allocation2], %s836
        // Predicated region
        $region49: #{tpu_custom_call.1} parent=39 // pred_check
          %p838 = pneg %p163
        $region50: #{tpu_custom_call.1} parent=39 // pred_check_branch
          %840 = sbr.rel (%p838) target = $region52
        $region51: #{tpu_custom_call.1} parent=39 // pred_region
          %s841 = smul.u32 8, %s25
        $region52: #{tpu_custom_call.1} parent=39 // pred_fallthru
          _
        // Predicated region
        $region53: #{tpu_custom_call.1} parent=39 // pred_check
          %p842 = pneg %p189
        $region54: #{tpu_custom_call.1} parent=39 // pred_check_branch
          %844 = sbr.rel (%p842) target = $region56
        $region55: #{tpu_custom_call.1} parent=39 // pred_region
          %s845 = smul.u32 8, %s25
          %s847 = ssub.s32 1024, 1024
          %848 = vsyncadd %s834, %s847
          %s849 = smul.addr %s845, 128
          %s850 = scalar_lea.hbm %s6, %s849
          %s851 = sshll.u32 %s837, 4
          %s852 = int_to_ptr.vmem [resolvable:$true] %s851
          %857 = dma.vmem_to_hbm [thread:$0]  %s852, 1024, %s850, %s834, 128, 128, 8
        $region56: #{tpu_custom_call.1} parent=39 // pred_fallthru
          _
      $region40: #{tpu_custom_call.1} parent=5 // pred_fallthru
        _
      %p858 = scmp.le.s32.totalorder 2, %s16
      // Predicated region
      $region57: #{tpu_custom_call.1} parent=5 // pred_check
        %p859 = pneg %p858
      $region58: #{tpu_custom_call.1} parent=5 // pred_check_branch
        %861 = sbr.rel (%p859) target = $region60
      $region59: #{tpu_custom_call.1} parent=5 // pred_region
        %s862 = ssub.s32 %s16, 2
        // Predicated region
        $region61: #{tpu_custom_call.1} parent=59 // pred_check
          %p863 = pneg %p169
        $region62: #{tpu_custom_call.1} parent=59 // pred_check_branch
          %865 = sbr.rel (%p863) target = $region64
        $region63: #{tpu_custom_call.1} parent=59 // pred_region
          %s866 = smul.u32 8, %s27
          %p867 = scmp.lt.s32.totalorder %s866, 15
          %s868 = scalar_select %p867, %s866, 15
          %s869 = smul.addr %s868, 8
          %s870 = scalar_lea.vmem %s5, %s869
        $region64: #{tpu_custom_call.1} parent=59 // pred_fallthru
          _
        // Predicated region
        $region65: #{tpu_custom_call.1} parent=59 // pred_check
          %p871 = pneg %p195
        $region66: #{tpu_custom_call.1} parent=59 // pred_check_branch
          %873 = sbr.rel (%p871) target = $region68
        $region67: #{tpu_custom_call.1} parent=59 // pred_region
          %s874 = sand.u32 %s180, 1
          %s875 = scalar_lea.sflag [#allocation3], %s874
          %s876 = sand.u32 %s180, 1
          %s877 = smul.addr %s876, 64
          %s878 = scalar_lea.vmem [#allocation2], %s877
          %879 = dma.done %s875, 1024
        $region68: #{tpu_custom_call.1} parent=59 // pred_fallthru
          _
      $region60: #{tpu_custom_call.1} parent=5 // pred_fallthru
        _
    $region6: #{tpu_custom_call.1} parent=1 // loop_footer
      %s20 = sadd.s32 1, %s16
    $region7: #{tpu_custom_call.1} parent=1 // loop_footer_branch
      %15 = sbr.rel target = $region3
    $region8: #{tpu_custom_call.1} parent=1 // loop_exit
      _
    %880 = vsyncpa [#allocation3], 1
    %s881 = scalar_lea.sflag [#allocation3], 1
    %882 = vsyncpa %s881, 1

</llo_original>
